<compile_context>
chip_gen: v6e
topology: v6e:2x2x1
jax: 0.10.0
libtpu: 0.0.40
codegen_flags: <defaults>
</compile_context>

<pallas_src>
import jax
import jax.numpy as jnp
from jax import lax
from jax.experimental import pallas as pl
from jax.experimental.pallas import tpu as pltpu

EPS = 1e-8  # same eps as torch.nn.CosineSimilarity default


# ----------------------------------------------------------------------------
# Kernel 1: row sums of squares (hoisted norm pass), accumulated over K blocks.
# ----------------------------------------------------------------------------
def _row_ssq_kernel(x_ref, o_ref):
    # x_ref: (tm, tk), o_ref: (tm, 1) f32 accumulator resident across the k axis.
    @pl.when(pl.program_id(1) == 0)
    def _():
        o_ref[...] = jnp.zeros_like(o_ref)

    xf = x_ref[...].astype(jnp.float32)
    o_ref[...] += jnp.sum(xf * xf, axis=-1, keepdims=True)


def _row_sum_sq(x_p, tm, tk):
    Mp, Kp = x_p.shape
    return pl.pallas_call(
        _row_ssq_kernel,
        out_shape=jax.ShapeDtypeStruct((Mp, 1), jnp.float32),
        grid=(Mp // tm, Kp // tk),
        in_specs=[pl.BlockSpec((tm, tk), lambda i, k: (i, k))],
        out_specs=pl.BlockSpec((tm, 1), lambda i, k: (i, 0)),
        compiler_params=pltpu.CompilerParams(
            dimension_semantics=("parallel", "arbitrary")),
    )(x_p)


# ----------------------------------------------------------------------------
# Kernel 2: tiled pairwise cosine similarity / temp.
# ----------------------------------------------------------------------------
def _pairwise_cos_kernel(inv_temp_ref, x_ref, y_ref, xsq_ref, ysq_ref,
                         o_ref, acc_ref):
    k = pl.program_id(2)

    @pl.when(k == 0)
    def _():
        acc_ref[...] = jnp.zeros_like(acc_ref)

    # (tm, tk) x (tn, tk), contracting dim 1 of both -> (tm, tn) on the MXU.
    # Native-dtype operands, f32 accumulation; transpose folded into contraction.
    acc_ref[...] += lax.dot_general(
        x_ref[...], y_ref[...],
        dimension_numbers=(((1,), (1,)), ((), ())),
        preferred_element_type=jnp.float32)

    @pl.when(k == pl.num_programs(2) - 1)
    def _():
        nx = jnp.sqrt(xsq_ref[...])                 # (tm, 1)
        ny = jnp.sqrt(ysq_ref[...])                 # (1, tn)
        denom = jnp.maximum(nx * ny, EPS)           # (tm, tn) product-clamp
        recip = pl.reciprocal(denom, approx=True)   # EUP slot, not VALU divide
        inv_temp = inv_temp_ref[0]                  # SMEM scalar (no recompile)
        o_ref[...] = (acc_ref[...] * recip * inv_temp).astype(o_ref.dtype)


def _round_up(n, m):
    return ((n + m - 1) // m) * m


def similarity(x, y, temp, *, tm=256, tn=256, tk=512):
    """Pairwise cosine similarity with temperature.

    x: (B, 1, H), y: (1, B', H)  ->  (B, B')
    Mirrors `Similarity(temp).forward(x, y)` for the usual broadcast shapes.
    """
    assert x.ndim == 3 and y.ndim == 3 and x.shape[-1] == y.shape[-1]
    M, H = x.shape[0], x.shape[-1]
    N = y.shape[1]
    x2d = x.reshape(M, H)                 # glue: squeeze broadcast dims
    y2d = y.reshape(N, H)
    out_dtype = jnp.result_type(x.dtype, y.dtype)

    # Pad to lane-/MXU-friendly multiples of 128, then to exact tile multiples.
    Mp, Np, Kp = _round_up(M, 128), _round_up(N, 128), _round_up(H, 128)
    tm, tn, tk = min(tm, Mp), min(tn, Np), min(tk, Kp)
    Mp, Np, Kp = _round_up(Mp, tm), _round_up(Np, tn), _round_up(Kp, tk)

    # Zero padding is exact: contributes nothing to dots or sums-of-squares.
    x_p = jnp.pad(x2d, ((0, Mp - M), (0, Kp - H)))
    y_p = jnp.pad(y2d, ((0, Np - N), (0, Kp - H)))

    # Hoisted norm pass (O(B*H)), shared across all output tiles.
    xsq = _row_sum_sq(x_p, tm, tk)                    # (Mp, 1) f32
    ysq = _row_sum_sq(y_p, tn, tk).reshape(1, Np)     # (1, Np) f32, lane-major

    inv_temp = jnp.asarray([1.0 / temp], dtype=jnp.float32)

    out = pl.pallas_call(
        _pairwise_cos_kernel,
        out_shape=jax.ShapeDtypeStruct((Mp, Np), out_dtype),
        grid=(Mp // tm, Np // tn, Kp // tk),
        in_specs=[
            pl.BlockSpec(memory_space=pltpu.MemorySpace.SMEM),   # inv_temp scalar
            pl.BlockSpec((tm, tk), lambda i, j, k: (i, k)),      # x tile
            pl.BlockSpec((tn, tk), lambda i, j, k: (j, k)),      # y tile (K-major)
            pl.BlockSpec((tm, 1), lambda i, j, k: (i, 0)),       # x sum-of-squares
            pl.BlockSpec((1, tn), lambda i, j, k: (0, j)),       # y sum-of-squares
        ],
        out_specs=pl.BlockSpec((tm, tn), lambda i, j, k: (i, j)),
        scratch_shapes=[pltpu.VMEM((tm, tn), jnp.float32)],
        compiler_params=pltpu.CompilerParams(
            dimension_semantics=("parallel", "parallel", "arbitrary"),
            vmem_limit_bytes=32 * 1024 * 1024),
    )(inv_temp, x_p, y_p, xsq, ysq)

    return out[:M, :N]


def similarity_ref(x, y, temp):
    # Pure-JAX reference matching torch semantics (broadcast + dim=-1 cosine).
    dots = jnp.sum(x * y, axis=-1)
    nx = jnp.sqrt(jnp.sum(x * x, axis=-1))
    ny = jnp.sqrt(jnp.sum(y * y, axis=-1))
    return dots / jnp.maximum(nx * ny, EPS) / temp


if __name__ == "__main__":
    temp = 0.05  # deterministic "parameter" from __init__(temp)
    key = jax.random.PRNGKey(0)

    # Small SimCSE-style demo (single-tile path after padding to 128).
    B, H = 8, 32
    kx, ky, kx2, ky2 = jax.random.split(key, 4)
    x = jax.random.normal(kx, (B, 1, H), dtype=jnp.float32)
    y = jax.random.normal(ky, (1, B, H), dtype=jnp.float32)

    out = jax.block_until_ready(similarity(x, y, temp))
    ref = similarity_ref(x, y, temp)
    assert out.shape == (B, B), out.shape
    assert jnp.allclose(out, ref, atol=1e-2, rtol=1e-2), "mismatch vs reference"

    # Second check: non-multiple shapes with a real multi-step grid (2,2,2),
    # exercising padding, K accumulation, and the pl.when finalize path.
    B2, H2 = 136, 200
    x2 = jax.random.normal(kx2, (B2, 1, H2), dtype=jnp.float32)
    y2 = jax.random.normal(ky2, (1, B2, H2), dtype=jnp.float32)
    out2 = jax.block_until_ready(similarity(x2, y2, temp, tm=128, tn=128, tk=128))
    ref2 = similarity_ref(x2, y2, temp)
    assert out2.shape == (B2, B2), out2.shape
    assert jnp.allclose(out2, ref2, atol=1e-2, rtol=1e-2), "mismatch vs reference (tiled)"

    print("KERNEL_OK")
</pallas_src>

<mosaic_0001>
module attributes {stable_mosaic.version = 11 : i64} {
  func.func @_row_ssq_kernel(%arg0: i32, %arg1: i32, %arg2: memref<128x128xf32, #tpu.memory_space<vmem>>, %arg3: memref<128x1xf32, #tpu.memory_space<vmem>>) attributes {dimension_semantics = [#tpu.dimension_semantics<parallel>, #tpu.dimension_semantics<arbitrary>], iteration_bounds = array<i64: 1, 1>, scalar_prefetch = 0 : i64, scratch_operands = 0 : i64, tpu.core_type = #tpu.core_type<tc>, window_params = [{transform_indices = @transform_0, window_bounds = array<i64: 128, 128>}, {transform_indices = @transform_1, window_bounds = array<i64: 128, 1>}]} {
    %c0_i32 = arith.constant 0 : i32
    %0 = arith.cmpi eq, %arg1, %c0_i32 : i32
    %1 = arith.extui %0 : i1 to i32
    %c0_i32_0 = arith.constant 0 : i32
    %2 = arith.cmpi ne, %1, %c0_i32_0 : i32
    scf.if %2 {
      %cst_6 = arith.constant 0.000000e+00 : f32
      %10 = vector.broadcast %cst_6 : f32 to vector<128x1xf32>
      %c0_7 = arith.constant 0 : index
      %c0_8 = arith.constant 0 : index
      %11 = vector.load %arg3[%c0_7, %c0_8] : memref<128x1xf32, #tpu.memory_space<vmem>>, vector<128x1xf32>
      tpu.vector_store %arg3[%c0_7, %c0_8], %10 {strides = array<i32>} : memref<128x1xf32, #tpu.memory_space<vmem>>, vector<128x1xf32>,
    } else {
    }
    %c0 = arith.constant 0 : index
    %c0_1 = arith.constant 0 : index
    %3 = vector.load %arg2[%c0, %c0_1] : memref<128x128xf32, #tpu.memory_space<vmem>>, vector<128x128xf32>
    %c0_2 = arith.constant 0 : index
    %c0_3 = arith.constant 0 : index
    %4 = vector.load %arg3[%c0_2, %c0_3] : memref<128x1xf32, #tpu.memory_space<vmem>>, vector<128x1xf32>
    %5 = arith.mulf %3, %3 : vector<128x128xf32>
    %cst = arith.constant dense<0.000000e+00> : vector<128xf32>
    %6 = vector.multi_reduction <add>, %5, %cst [1] : vector<128x128xf32> to vector<128xf32>
    %7 = vector.shape_cast %6 : vector<128xf32> to vector<128x1xf32>
    %8 = arith.addf %4, %7 : vector<128x1xf32>
    %c0_4 = arith.constant 0 : index
    %c0_5 = arith.constant 0 : index
    %9 = vector.load %arg3[%c0_4, %c0_5] : memref<128x1xf32, #tpu.memory_space<vmem>>, vector<128x1xf32>
    tpu.vector_store %arg3[%c0_4, %c0_5], %8 {strides = array<i32>} : memref<128x1xf32, #tpu.memory_space<vmem>>, vector<128x1xf32>,
    return
  }
  func.func @transform_0(%arg0: i32, %arg1: i32) -> (i32, i32) {
    %c0_i32 = arith.constant 0 : i32
    return %arg0, %arg1 : i32, i32
  }
  func.func @transform_1(%arg0: i32, %arg1: i32) -> (i32, i32) {
    %c0_i32 = arith.constant 0 : i32
    %c0_i32_0 = arith.constant 0 : i32
    return %arg0, %c0_i32 : i32, i32
  }
}

</mosaic_0001>

<llo_original>
// kernel: tpu_custom_call.1
$region0: #{tpu_custom_call.1}
  #allocation0 [shape = 'u32[]', space=smem, size = 0x4, offset = 0x4, fixed_abs, tag = 'smem constant byte address 0x4 - core index']
  #allocation1 [shape = 'u32[144,128]{1,0:T(1,128)}', space=vmem, size = 0x12000, scoped, tag = 'internal scratch']
  %s0 = inlined_call_operand.hbm [shape: f32[128,128], index: 0, kind: input, shape index: {}]
  %s1 = inlined_call_operand.vmem [shape: f32[128,1], index: 1, kind: output, shape index: {}]
  %s2 = sld [smem:[#allocation0]]
  $region22: #{tpu_custom_call.1} parent=0
    _
  %s4 = ssub.s32 1, %s2
  %s5 = scalar_select 0, %s4, %s2
  $region1: #{tpu_custom_call.1} parent=0
    #allocation2 [shape = 'u8[65536]{0}', space=vmem, size = 0x10000, scoped, tag = 'input window, operand 0, single buffered']
    #allocation3 [shape = 's32[1]{0}', space=sflag, size = 0x4, scoped, tag = 'scoped memory for tpu_custom_call.1']
    %6 = vsyncpa [#allocation3], 0
    // Predicated region
    $region2: #{tpu_custom_call.1} parent=1 // pred_check
      _
    $region3: #{tpu_custom_call.1} parent=1 // pred_check_branch
      %8 = sbr.rel (0) target = $region5
    $region4: #{tpu_custom_call.1} parent=1 // pred_region
      %s10 = ssub.s32 2048, 2048
      %11 = vsyncadd [#allocation3], %s10
      %s12 = sshll.u32 [#allocation2], 4
      %s13 = int_to_ptr.vmem [resolvable:$true] %s12
      %18 = dma.hbm_to_vmem [thread:$0]  %s0, 2048, %s13, [#allocation3], 128, 128, 8
    $region5: #{tpu_custom_call.1} parent=1 // pred_fallthru
      _
    // Predicated region
    $region6: #{tpu_custom_call.1} parent=1 // pred_check
      _
    $region7: #{tpu_custom_call.1} parent=1 // pred_check_branch
      %20 = sbr.rel (0) target = $region9
    $region8: #{tpu_custom_call.1} parent=1 // pred_region
      %21 = dma.done [#allocation3], 2048
    $region9: #{tpu_custom_call.1} parent=1 // pred_fallthru
      _
    %p22 = scmp.eq.s32.totalorder 0, 0
    // Predicated region
    $region10: #{tpu_custom_call.1} parent=1 // pred_check
      %p23 = pneg %p22
    $region11: #{tpu_custom_call.1} parent=1 // pred_check_branch
      %25 = sbr.rel (%p23) target = $region13
    $region12: #{tpu_custom_call.1} parent=1 // pred_region
      %vm26 = vcmask 7168
      %27 = vst.msk [vmem:[%s1] sm:$0xff] %vm26, 0.0
      %28 = vst.msk [vmem:[%s1 + $0x8] sm:$0xff] %vm26, 0.0
      %29 = vst.msk [vmem:[%s1 + $0x10] sm:$0xff] %vm26, 0.0
      %30 = vst.msk [vmem:[%s1 + $0x18] sm:$0xff] %vm26, 0.0
      %31 = vst.msk [vmem:[%s1 + $0x20] sm:$0xff] %vm26, 0.0
      %32 = vst.msk [vmem:[%s1 + $0x28] sm:$0xff] %vm26, 0.0
      %33 = vst.msk [vmem:[%s1 + $0x30] sm:$0xff] %vm26, 0.0
      %34 = vst.msk [vmem:[%s1 + $0x38] sm:$0xff] %vm26, 0.0
      %35 = vst.msk [vmem:[%s1 + $0x40] sm:$0xff] %vm26, 0.0
      %36 = vst.msk [vmem:[%s1 + $0x48] sm:$0xff] %vm26, 0.0
      %37 = vst.msk [vmem:[%s1 + $0x50] sm:$0xff] %vm26, 0.0
      %38 = vst.msk [vmem:[%s1 + $0x58] sm:$0xff] %vm26, 0.0
      %39 = vst.msk [vmem:[%s1 + $0x60] sm:$0xff] %vm26, 0.0
      %40 = vst.msk [vmem:[%s1 + $0x68] sm:$0xff] %vm26, 0.0
      %41 = vst.msk [vmem:[%s1 + $0x70] sm:$0xff] %vm26, 0.0
      %42 = vst.msk [vmem:[%s1 + $0x78] sm:$0xff] %vm26, 0.0
    $region13: #{tpu_custom_call.1} parent=1 // pred_fallthru
      _
    %v43 = vld [vmem:[#allocation2] sm:$0xff]
    %v44 = vld [vmem:[#allocation2 + $0x8] sm:$0xff]
    %v45 = vld [vmem:[#allocation2 + $0x10] sm:$0xff]
    %v46 = vld [vmem:[#allocation2 + $0x18] sm:$0xff]
    %v47 = vld [vmem:[#allocation2 + $0x20] sm:$0xff]
    %v48 = vld [vmem:[#allocation2 + $0x28] sm:$0xff]
    %v49 = vld [vmem:[#allocation2 + $0x30] sm:$0xff]
    %v50 = vld [vmem:[#allocation2 + $0x38] sm:$0xff]
    %v51 = vld [vmem:[#allocation2 + $0x40] sm:$0xff]
    %v52 = vld [vmem:[#allocation2 + $0x48] sm:$0xff]
    %v53 = vld [vmem:[#allocation2 + $0x50] sm:$0xff]
    %v54 = vld [vmem:[#allocation2 + $0x58] sm:$0xff]
    %v55 = vld [vmem:[#allocation2 + $0x60] sm:$0xff]
    %v56 = vld [vmem:[#allocation2 + $0x68] sm:$0xff]
    %v57 = vld [vmem:[#allocation2 + $0x70] sm:$0xff]
    %v58 = vld [vmem:[#allocation2 + $0x78] sm:$0xff]
    %v59 = vld [vmem:[%s1] sm:$0xff]
    %v60 = vld [vmem:[%s1 + $0x8] sm:$0xff]
    %v61 = vld [vmem:[%s1 + $0x10] sm:$0xff]
    %v62 = vld [vmem:[%s1 + $0x18] sm:$0xff]
    %v63 = vld [vmem:[%s1 + $0x20] sm:$0xff]
    %v64 = vld [vmem:[%s1 + $0x28] sm:$0xff]
    %v65 = vld [vmem:[%s1 + $0x30] sm:$0xff]
    %v66 = vld [vmem:[%s1 + $0x38] sm:$0xff]
    %v67 = vld [vmem:[%s1 + $0x40] sm:$0xff]
    %v68 = vld [vmem:[%s1 + $0x48] sm:$0xff]
    %v69 = vld [vmem:[%s1 + $0x50] sm:$0xff]
    %v70 = vld [vmem:[%s1 + $0x58] sm:$0xff]
    %v71 = vld [vmem:[%s1 + $0x60] sm:$0xff]
    %v72 = vld [vmem:[%s1 + $0x68] sm:$0xff]
    %v73 = vld [vmem:[%s1 + $0x70] sm:$0xff]
    %v74 = vld [vmem:[%s1 + $0x78] sm:$0xff]
    %v75 = vmul.f32 %v43, %v43
    %v76 = vmul.f32 %v44, %v44
    %v77 = vmul.f32 %v45, %v45
    %v78 = vmul.f32 %v46, %v46
    %v79 = vmul.f32 %v47, %v47
    %v80 = vmul.f32 %v48, %v48
    %v81 = vmul.f32 %v49, %v49
    %v82 = vmul.f32 %v50, %v50
    %v83 = vmul.f32 %v51, %v51
    %v84 = vmul.f32 %v52, %v52
    %v85 = vmul.f32 %v53, %v53
    %v86 = vmul.f32 %v54, %v54
    %v87 = vmul.f32 %v55, %v55
    %v88 = vmul.f32 %v56, %v56
    %v89 = vmul.f32 %v57, %v57
    %v90 = vmul.f32 %v58, %v58
    %91 = vadd.xlane.f32.xlu0 %v75
    %v92 = vpop.xlane.xlu0 %91
    %93 = vadd.xlane.f32.xlu0 %v76
    %v94 = vpop.xlane.xlu0 %93
    %95 = vadd.xlane.f32.xlu0 %v77
    %v96 = vpop.xlane.xlu0 %95
    %97 = vadd.xlane.f32.xlu0 %v78
    %v98 = vpop.xlane.xlu0 %97
    %99 = vadd.xlane.f32.xlu0 %v79
    %v100 = vpop.xlane.xlu0 %99
    %101 = vadd.xlane.f32.xlu0 %v80
    %v102 = vpop.xlane.xlu0 %101
    %103 = vadd.xlane.f32.xlu0 %v81
    %v104 = vpop.xlane.xlu0 %103
    %105 = vadd.xlane.f32.xlu0 %v82
    %v106 = vpop.xlane.xlu0 %105
    %107 = vadd.xlane.f32.xlu0 %v83
    %v108 = vpop.xlane.xlu0 %107
    %109 = vadd.xlane.f32.xlu0 %v84
    %v110 = vpop.xlane.xlu0 %109
    %111 = vadd.xlane.f32.xlu0 %v85
    %v112 = vpop.xlane.xlu0 %111
    %113 = vadd.xlane.f32.xlu0 %v86
    %v114 = vpop.xlane.xlu0 %113
    %115 = vadd.xlane.f32.xlu0 %v87
    %v116 = vpop.xlane.xlu0 %115
    %117 = vadd.xlane.f32.xlu0 %v88
    %v118 = vpop.xlane.xlu0 %117
    %119 = vadd.xlane.f32.xlu0 %v89
    %v120 = vpop.xlane.xlu0 %119
    %121 = vadd.xlane.f32.xlu0 %v90
    %v122 = vpop.xlane.xlu0 %121
    %v123 = vadd.f32 %v59, %v92
    %v124 = vadd.f32 %v60, %v94
    %v125 = vadd.f32 %v61, %v96
    %v126 = vadd.f32 %v62, %v98
    %v127 = vadd.f32 %v63, %v100
    %v128 = vadd.f32 %v64, %v102
    %v129 = vadd.f32 %v65, %v104
    %v130 = vadd.f32 %v66, %v106
    %v131 = vadd.f32 %v67, %v108
    %v132 = vadd.f32 %v68, %v110
    %v133 = vadd.f32 %v69, %v112
    %v134 = vadd.f32 %v70, %v114
    %v135 = vadd.f32 %v71, %v116
    %v136 = vadd.f32 %v72, %v118
    %v137 = vadd.f32 %v73, %v120
    %v138 = vadd.f32 %v74, %v122
    %vm139 = vcmask 7168
    %140 = vst.msk [vmem:[%s1] sm:$0xff] %vm139, %v123
    %141 = vst.msk [vmem:[%s1 + $0x8] sm:$0xff] %vm139, %v124
    %142 = vst.msk [vmem:[%s1 + $0x10] sm:$0xff] %vm139, %v125
    %143 = vst.msk [vmem:[%s1 + $0x18] sm:$0xff] %vm139, %v126
    %144 = vst.msk [vmem:[%s1 + $0x20] sm:$0xff] %vm139, %v127
    %145 = vst.msk [vmem:[%s1 + $0x28] sm:$0xff] %vm139, %v128
    %146 = vst.msk [vmem:[%s1 + $0x30] sm:$0xff] %vm139, %v129
    %147 = vst.msk [vmem:[%s1 + $0x38] sm:$0xff] %vm139, %v130
    %148 = vst.msk [vmem:[%s1 + $0x40] sm:$0xff] %vm139, %v131
    %149 = vst.msk [vmem:[%s1 + $0x48] sm:$0xff] %vm139, %v132
    %150 = vst.msk [vmem:[%s1 + $0x50] sm:$0xff] %vm139, %v133
    %151 = vst.msk [vmem:[%s1 + $0x58] sm:$0xff] %vm139, %v134
    %152 = vst.msk [vmem:[%s1 + $0x60] sm:$0xff] %vm139, %v135
    %153 = vst.msk [vmem:[%s1 + $0x68] sm:$0xff] %vm139, %v136
    %154 = vst.msk [vmem:[%s1 + $0x70] sm:$0xff] %vm139, %v137
    %155 = vst.msk [vmem:[%s1 + $0x78] sm:$0xff] %vm139, %v138
    // Predicated region
    $region14: #{tpu_custom_call.1} parent=1 // pred_check
      _
    $region15: #{tpu_custom_call.1} parent=1 // pred_check_branch
      %157 = sbr.rel (0) target = $region17
    $region16: #{tpu_custom_call.1} parent=1 // pred_region
      _
    $region17: #{tpu_custom_call.1} parent=1 // pred_fallthru
      _
    // Predicated region
    $region18: #{tpu_custom_call.1} parent=1 // pred_check
      _
    $region19: #{tpu_custom_call.1} parent=1 // pred_check_branch
      %159 = sbr.rel (0) target = $region21
    $region20: #{tpu_custom_call.1} parent=1 // pred_region
      _
    $region21: #{tpu_custom_call.1} parent=1 // pred_fallthru
      _
    %160 = vsyncpa [#allocation3], 1

</llo_original>
